<compile_context>
chip_gen: v7x
topology: tpu7x:2x2x1
jax: 0.10.0
libtpu: 0.0.40
codegen_flags: <defaults>
</compile_context>

<pallas_src>
import functools

import jax
import jax.numpy as jnp
from jax.experimental import pallas as pl
from jax.experimental.pallas import tpu as pltpu


def _round_up(x, m):
    return ((x + m - 1) // m) * m


def _cdiv(a, b):
    return (a + b - 1) // b


def _mlp_kernel(x_ref, p_ref, o_ref, *, in_dim, hidden_dim, out_dim):
    # x_ref: (TB, in_dim) VMEM, natural layout (batch on sublanes).
    # p_ref: (8*, max(hidden,out)) VMEM packed params:
    #        rows [0, in)            -> w1.T   (in, hidden)
    #        row  in                 -> b1     (hidden,)
    #        rows [in+1, in+1+hid)   -> w2.T   (hidden, out)
    #        row  in+1+hid           -> b2     (out,)
    # o_ref: (TB, out_dim) VMEM.
    # Loops below unroll at trace time (in/hidden/out are tiny Python ints),
    # so the body is a few VPU broadcast-FMAs per tile -- no MXU involvement.
    x = x_ref[...]                                            # load tile once
    p = p_ref[...]                                            # load params once

    w1t = p[0:in_dim, 0:hidden_dim]                           # (in, hid)
    b1 = p[in_dim:in_dim + 1, 0:hidden_dim]                   # (1, hid)
    w2t = p[in_dim + 1:in_dim + 1 + hidden_dim, 0:out_dim]    # (hid, out)
    b2 = p[in_dim + 1 + hidden_dim:in_dim + 2 + hidden_dim, 0:out_dim]

    # Layer 1: h = relu(x @ w1.T + b1), accumulated as rank-1 updates.
    h = b1                                                    # bias folded in
    for k in range(in_dim):
        h = h + x[:, k:k + 1] * w1t[k:k + 1, :]               # (TB,1)*(1,hid)
    h = jnp.maximum(h, 0.0)                                   # (TB, hid)

    # Layer 2: y = h @ w2.T + b2.
    y = b2
    for j in range(hidden_dim):
        y = y + h[:, j:j + 1] * w2t[j:j + 1, :]               # (TB,1)*(1,out)
    o_ref[...] = y.astype(o_ref.dtype)                        # lane-masked store


def _pack_params(w1, b1, w2, b2):
    """Pack all weights/biases into a single small f32 tile (one operand)."""
    hidden_dim, in_dim = w1.shape
    out_dim = w2.shape[0]
    width = max(hidden_dim, out_dim)
    rows = in_dim + hidden_dim + 2
    rows_pad = _round_up(rows, 8)                 # one sublane tile for 3/3/2
    p = jnp.zeros((rows_pad, width), jnp.float32)
    p = p.at[0:in_dim, 0:hidden_dim].set(w1.T.astype(jnp.float32))
    p = p.at[in_dim, 0:hidden_dim].set(b1.astype(jnp.float32))
    p = p.at[in_dim + 1:in_dim + 1 + hidden_dim, 0:out_dim].set(
        w2.T.astype(jnp.float32))
    p = p.at[in_dim + 1 + hidden_dim, 0:out_dim].set(b2.astype(jnp.float32))
    return p


def net_forward(x, w1, b1, w2, b2, *, max_block_rows=4096):
    """Forward pass of Net.

    x : (B, in_dim) f32
    w1: (hidden_dim, in_dim)  f32   (PyTorch nn.Linear weight layout)
    b1: (hidden_dim,)         f32
    w2: (out_dim, hidden_dim) f32
    b2: (out_dim,)            f32
    returns (B, out_dim) f32
    """
    B, in_dim = x.shape
    hidden_dim = w1.shape[0]
    out_dim = w2.shape[0]

    params = _pack_params(w1, b1, w2, b2)
    p_rows, p_cols = params.shape

    # Batch tiling: one big block for small/moderate B; otherwise ~4K-row
    # blocks with an even step count so "parallel" semantics keep both v7x
    # TensorCores busy.  No input padding: Pallas clips the boundary block
    # (OOB reads only feed OOB rows, OOB writes are dropped).
    if B <= max_block_rows:
        tb = B
        num_blocks = 1
    else:
        n = _cdiv(B, max_block_rows)
        n += n % 2                        # even number of grid steps (v7x)
        tb = _round_up(_cdiv(B, n), 8)    # sublane-aligned block rows
        num_blocks = _cdiv(B, tb)

    kernel = functools.partial(
        _mlp_kernel, in_dim=in_dim, hidden_dim=hidden_dim, out_dim=out_dim)

    flops = 2 * B * (in_dim * hidden_dim + hidden_dim * out_dim)
    bytes_accessed = 4 * (B * (in_dim + out_dim) + params.size)

    return pl.pallas_call(
        kernel,
        out_shape=jax.ShapeDtypeStruct((B, out_dim), x.dtype),
        grid_spec=pl.GridSpec(
            grid=(num_blocks,),
            in_specs=[
                # Activations: batch-tiled, natural layout (full last dim).
                pl.BlockSpec((tb, in_dim), lambda i: (i, 0)),
                # Single packed parameter tile, resident across grid steps.
                pl.BlockSpec((p_rows, p_cols), lambda i: (0, 0)),
            ],
            out_specs=pl.BlockSpec((tb, out_dim), lambda i: (i, 0)),
        ),
        compiler_params=pltpu.CompilerParams(
            dimension_semantics=("parallel",),
            vmem_limit_bytes=32 * 1024 * 1024,
        ),
        cost_estimate=pl.CostEstimate(
            flops=flops, transcendentals=0, bytes_accessed=bytes_accessed),
    )(x, params)


def init_params(key, in_dim=3, hidden_dim=3, out_dim=2):
    """Deterministic init, PyTorch-Linear-like uniform bounds, PyTorch layout."""
    k1, k2, k3, k4 = jax.random.split(key, 4)
    bound1 = 1.0 / (in_dim ** 0.5)
    bound2 = 1.0 / (hidden_dim ** 0.5)
    w1 = jax.random.uniform(k1, (hidden_dim, in_dim), jnp.float32, -bound1, bound1)
    b1 = jax.random.uniform(k2, (hidden_dim,), jnp.float32, -bound1, bound1)
    w2 = jax.random.uniform(k3, (out_dim, hidden_dim), jnp.float32, -bound2, bound2)
    b2 = jax.random.uniform(k4, (out_dim,), jnp.float32, -bound2, bound2)
    return w1, b1, w2, b2


def _reference(x, w1, b1, w2, b2):
    return jnp.maximum(x @ w1.T + b1, 0.0) @ w2.T + b2


if __name__ == "__main__":
    key = jax.random.PRNGKey(0)
    k_x1, k_x2, k_x3, k_p = jax.random.split(key, 4)

    in_dim, hidden_dim, out_dim = 3, 3, 2
    w1, b1, w2, b2 = init_params(k_p, in_dim, hidden_dim, out_dim)

    # Small batch (matches the original spec usage): single block, grid=(1,).
    batch = 8
    x = jax.random.normal(k_x1, (batch, in_dim), jnp.float32)
    out = jax.block_until_ready(net_forward(x, w1, b1, w2, b2))
    ref = _reference(x, w1, b1, w2, b2)
    assert out.shape == (batch, out_dim)
    assert jnp.allclose(out, ref, atol=1e-5, rtol=1e-5)

    # Moderate, non-multiple-of-8 batch: still a single full-array block.
    batch2 = 1100
    x2 = jax.random.normal(k_x2, (batch2, in_dim), jnp.float32)
    out2 = jax.block_until_ready(net_forward(x2, w1, b1, w2, b2))
    ref2 = _reference(x2, w1, b1, w2, b2)
    assert out2.shape == (batch2, out_dim)
    assert jnp.allclose(out2, ref2, atol=1e-5, rtol=1e-5)

    # Larger batch with a forced small tile: exercises the multi-step
    # "parallel" grid and the clipped (remainder) boundary block.
    batch3 = 2500
    x3 = jax.random.normal(k_x3, (batch3, in_dim), jnp.float32)
    out3 = jax.block_until_ready(
        net_forward(x3, w1, b1, w2, b2, max_block_rows=1024))
    ref3 = _reference(x3, w1, b1, w2, b2)
    assert out3.shape == (batch3, out_dim)
    assert jnp.allclose(out3, ref3, atol=1e-5, rtol=1e-5)

    print("KERNEL_OK")
</pallas_src>

<mosaic_0001>
module attributes {stable_mosaic.version = 11 : i64} {
  func.func @_mlp_kernel(%arg0: i32, %arg1: memref<8x3xf32, #tpu.memory_space<vmem>>, %arg2: memref<8x3xf32, #tpu.memory_space<vmem>>, %arg3: memref<8x2xf32, #tpu.memory_space<vmem>>) attributes {dimension_semantics = [#tpu.dimension_semantics<parallel>], iteration_bounds = array<i64: 1>, scalar_prefetch = 0 : i64, scratch_operands = 0 : i64, tpu.core_type = #tpu.core_type<tc>, window_params = [{transform_indices = @transform_0, window_bounds = array<i64: 8, 3>}, {pipeline_mode = #tpu.pipeline_mode<synchronous>, transform_indices = @transform_1, window_bounds = array<i64: 8, 3>}, {transform_indices = @transform_2, window_bounds = array<i64: 8, 2>}]} {
    %c0 = arith.constant 0 : index
    %c0_0 = arith.constant 0 : index
    %0 = vector.load %arg1[%c0, %c0_0] : memref<8x3xf32, #tpu.memory_space<vmem>>, vector<8x3xf32>
    %c0_1 = arith.constant 0 : index
    %c0_2 = arith.constant 0 : index
    %1 = vector.load %arg2[%c0_1, %c0_2] : memref<8x3xf32, #tpu.memory_space<vmem>>, vector<8x3xf32>
    %2 = vector.extract_strided_slice %1 {offsets = [0, 0], sizes = [3, 3], strides = [1, 1]} : vector<8x3xf32> to vector<3x3xf32>
    %3 = vector.extract_strided_slice %1 {offsets = [3, 0], sizes = [1, 3], strides = [1, 1]} : vector<8x3xf32> to vector<1x3xf32>
    %4 = vector.extract_strided_slice %1 {offsets = [4, 0], sizes = [3, 2], strides = [1, 1]} : vector<8x3xf32> to vector<3x2xf32>
    %5 = vector.extract_strided_slice %1 {offsets = [7, 0], sizes = [1, 2], strides = [1, 1]} : vector<8x3xf32> to vector<1x2xf32>
    %6 = vector.extract_strided_slice %0 {offsets = [0, 0], sizes = [8, 1], strides = [1, 1]} : vector<8x3xf32> to vector<8x1xf32>
    %7 = vector.extract_strided_slice %2 {offsets = [0, 0], sizes = [1, 3], strides = [1, 1]} : vector<3x3xf32> to vector<1x3xf32>
    %8 = vector.broadcast %6 : vector<8x1xf32> to vector<8x3xf32>
    %9 = vector.broadcast %7 : vector<1x3xf32> to vector<8x3xf32>
    %10 = arith.mulf %8, %9 : vector<8x3xf32>
    %11 = vector.broadcast %3 : vector<1x3xf32> to vector<8x3xf32>
    %12 = arith.addf %11, %10 : vector<8x3xf32>
    %13 = vector.extract_strided_slice %0 {offsets = [0, 1], sizes = [8, 1], strides = [1, 1]} : vector<8x3xf32> to vector<8x1xf32>
    %14 = vector.extract_strided_slice %2 {offsets = [1, 0], sizes = [1, 3], strides = [1, 1]} : vector<3x3xf32> to vector<1x3xf32>
    %15 = vector.broadcast %13 : vector<8x1xf32> to vector<8x3xf32>
    %16 = vector.broadcast %14 : vector<1x3xf32> to vector<8x3xf32>
    %17 = arith.mulf %15, %16 : vector<8x3xf32>
    %18 = arith.addf %12, %17 : vector<8x3xf32>
    %19 = vector.extract_strided_slice %0 {offsets = [0, 2], sizes = [8, 1], strides = [1, 1]} : vector<8x3xf32> to vector<8x1xf32>
    %20 = vector.extract_strided_slice %2 {offsets = [2, 0], sizes = [1, 3], strides = [1, 1]} : vector<3x3xf32> to vector<1x3xf32>
    %21 = vector.broadcast %19 : vector<8x1xf32> to vector<8x3xf32>
    %22 = vector.broadcast %20 : vector<1x3xf32> to vector<8x3xf32>
    %23 = arith.mulf %21, %22 : vector<8x3xf32>
    %24 = arith.addf %18, %23 : vector<8x3xf32>
    %cst = arith.constant 0.000000e+00 : f32
    %25 = vector.broadcast %cst : f32 to vector<8x3xf32>
    %26 = arith.maximumf %24, %25 : vector<8x3xf32>
    %27 = vector.extract_strided_slice %26 {offsets = [0, 0], sizes = [8, 1], strides = [1, 1]} : vector<8x3xf32> to vector<8x1xf32>
    %28 = vector.extract_strided_slice %4 {offsets = [0, 0], sizes = [1, 2], strides = [1, 1]} : vector<3x2xf32> to vector<1x2xf32>
    %29 = vector.broadcast %27 : vector<8x1xf32> to vector<8x2xf32>
    %30 = vector.broadcast %28 : vector<1x2xf32> to vector<8x2xf32>
    %31 = arith.mulf %29, %30 : vector<8x2xf32>
    %32 = vector.broadcast %5 : vector<1x2xf32> to vector<8x2xf32>
    %33 = arith.addf %32, %31 : vector<8x2xf32>
    %34 = vector.extract_strided_slice %26 {offsets = [0, 1], sizes = [8, 1], strides = [1, 1]} : vector<8x3xf32> to vector<8x1xf32>
    %35 = vector.extract_strided_slice %4 {offsets = [1, 0], sizes = [1, 2], strides = [1, 1]} : vector<3x2xf32> to vector<1x2xf32>
    %36 = vector.broadcast %34 : vector<8x1xf32> to vector<8x2xf32>
    %37 = vector.broadcast %35 : vector<1x2xf32> to vector<8x2xf32>
    %38 = arith.mulf %36, %37 : vector<8x2xf32>
    %39 = arith.addf %33, %38 : vector<8x2xf32>
    %40 = vector.extract_strided_slice %26 {offsets = [0, 2], sizes = [8, 1], strides = [1, 1]} : vector<8x3xf32> to vector<8x1xf32>
    %41 = vector.extract_strided_slice %4 {offsets = [2, 0], sizes = [1, 2], strides = [1, 1]} : vector<3x2xf32> to vector<1x2xf32>
    %42 = vector.broadcast %40 : vector<8x1xf32> to vector<8x2xf32>
    %43 = vector.broadcast %41 : vector<1x2xf32> to vector<8x2xf32>
    %44 = arith.mulf %42, %43 : vector<8x2xf32>
    %45 = arith.addf %39, %44 : vector<8x2xf32>
    %c0_3 = arith.constant 0 : index
    %c0_4 = arith.constant 0 : index
    %46 = vector.load %arg3[%c0_3, %c0_4] : memref<8x2xf32, #tpu.memory_space<vmem>>, vector<8x2xf32>
    tpu.vector_store %arg3[%c0_3, %c0_4], %45 {strides = array<i32>} : memref<8x2xf32, #tpu.memory_space<vmem>>, vector<8x2xf32>,
    return
  }
  func.func @transform_0(%arg0: i32) -> (i32, i32) {
    %c0_i32 = arith.constant 0 : i32
    %c0_i32_0 = arith.constant 0 : i32
    return %arg0, %c0_i32 : i32, i32
  }
  func.func @transform_1(%arg0: i32) -> (i32, i32) {
    %c0_i32 = arith.constant 0 : i32
    %c0_i32_0 = arith.constant 0 : i32
    %c0_i32_1 = arith.constant 0 : i32
    return %c0_i32, %c0_i32_0 : i32, i32
  }
  func.func @transform_2(%arg0: i32) -> (i32, i32) {
    %c0_i32 = arith.constant 0 : i32
    %c0_i32_0 = arith.constant 0 : i32
    return %arg0, %c0_i32 : i32, i32
  }
}

</mosaic_0001>

<llo_original>
// kernel: tpu_custom_call.1
$region0: #{tpu_custom_call.1}
  #allocation0 [shape = 'u32[]', space=smem, size = 0x4, offset = 0x4, fixed_abs, tag = 'smem constant byte address 0x4 - core index']
  #allocation1 [shape = 'u32[144,128]{1,0:T(1,128)}', space=vmem, size = 0x12000, scoped, tag = 'internal scratch']
  %s0 = inlined_call_operand.vmem [shape: f32[8,3], index: 0, kind: input, shape index: {}]
  %s1 = inlined_call_operand.vmem [shape: f32[8,3], index: 1, kind: input, shape index: {}]
  %s2 = inlined_call_operand.vmem [shape: f32[8,2], index: 2, kind: output, shape index: {}]
  %s3 = sld [smem:[#allocation0]]
  $region18: #{tpu_custom_call.1} parent=0
    _
  %s5 = ssub.s32 1, %s3
  %s6 = scalar_select 0, %s5, %s3
  // Predicated region
  $region2: #{tpu_custom_call.1} parent=0 // pred_check
    _
  $region3: #{tpu_custom_call.1} parent=0 // pred_check_branch
    %8 = sbr.rel (0) target = $region5
  $region4: #{tpu_custom_call.1} parent=0 // pred_region
    _
  $region5: #{tpu_custom_call.1} parent=0 // pred_fallthru
    _
  // Predicated region
  $region6: #{tpu_custom_call.1} parent=0 // pred_check
    _
  $region7: #{tpu_custom_call.1} parent=0 // pred_check_branch
    %10 = sbr.rel (0) target = $region9
  $region8: #{tpu_custom_call.1} parent=0 // pred_region
    _
  $region9: #{tpu_custom_call.1} parent=0 // pred_fallthru
    _
  %v11 = vld [vmem:[%s0] sm:$0xff]
  %v12 = vld [vmem:[%s1] sm:$0xff]
  %14 = vset.pattern.permute.xlu0 0
  %15 = vperm.xlu0 %14, %v11
  %v16 = vpop.permute.xlu0 %15
  %v18 = vlaneseq
  %v19 = vshrl.u32 %v18, 7
  %v20 = vsub.s32 0, %v19
  %v21 = vrot.slane %v12, %v20
  %v22 = vmul.f32 %v16, %v21
  %v23 = vlaneseq
  %v24 = vshrl.u32 %v23, 7
  %v25 = vsub.s32 3, %v24
  %v26 = vrot.slane %v12, %v25
  %v27 = vadd.f32 %v26, %v22
  %28 = vset.pattern.permute.xlu0 1
  %29 = vperm.xlu0 %28, %v11
  %v30 = vpop.permute.xlu0 %29
  %v32 = vlaneseq
  %v33 = vshrl.u32 %v32, 7
  %v34 = vsub.s32 1, %v33
  %v35 = vrot.slane %v12, %v34
  %v36 = vmul.f32 %v30, %v35
  %v37 = vadd.f32 %v27, %v36
  %38 = vset.pattern.permute.xlu0 2
  %39 = vperm.xlu0 %38, %v11
  %v40 = vpop.permute.xlu0 %39
  %v42 = vlaneseq
  %v43 = vshrl.u32 %v42, 7
  %v44 = vsub.s32 2, %v43
  %v45 = vrot.slane %v12, %v44
  %v46 = vmul.f32 %v40, %v45
  %v47 = vadd.f32 %v37, %v46
  %v48 = vmax.f32 %v47, 0.0
  %50 = vset.pattern.permute.xlu0 0
  %51 = vperm.xlu0 %50, %v48
  %v52 = vpop.permute.xlu0 %51
  %v54 = vlaneseq
  %v55 = vshrl.u32 %v54, 7
  %v56 = vsub.s32 4, %v55
  %v57 = vrot.slane %v12, %v56
  %v58 = vmul.f32 %v52, %v57
  %v59 = vlaneseq
  %v60 = vshrl.u32 %v59, 7
  %v61 = vsub.s32 7, %v60
  %v62 = vrot.slane %v12, %v61
  %v63 = vadd.f32 %v62, %v58
  %64 = vset.pattern.permute.xlu0 1
  %65 = vperm.xlu0 %64, %v48
  %v66 = vpop.permute.xlu0 %65
  %v68 = vlaneseq
  %v69 = vshrl.u32 %v68, 7
  %v70 = vsub.s32 5, %v69
  %v71 = vrot.slane %v12, %v70
  %v72 = vmul.f32 %v66, %v71
  %v73 = vadd.f32 %v63, %v72
  %74 = vset.pattern.permute.xlu0 2
  %75 = vperm.xlu0 %74, %v48
  %v76 = vpop.permute.xlu0 %75
  %v78 = vlaneseq
  %v79 = vshrl.u32 %v78, 7
  %v80 = vsub.s32 6, %v79
  %v81 = vrot.slane %v12, %v80
  %v82 = vmul.f32 %v76, %v81
  %v83 = vadd.f32 %v73, %v82
  %vm84 = vcmask 15360
  %85 = vst.msk [vmem:[%s2] sm:$0xff] %vm84, %v83
  // Predicated region
  $region10: #{tpu_custom_call.1} parent=0 // pred_check
    _
  $region11: #{tpu_custom_call.1} parent=0 // pred_check_branch
    %87 = sbr.rel (0) target = $region13
  $region12: #{tpu_custom_call.1} parent=0 // pred_region
    _
  $region13: #{tpu_custom_call.1} parent=0 // pred_fallthru
    _
  // Predicated region
  $region14: #{tpu_custom_call.1} parent=0 // pred_check
    _
  $region15: #{tpu_custom_call.1} parent=0 // pred_check_branch
    %89 = sbr.rel (0) target = $region17
  $region16: #{tpu_custom_call.1} parent=0 // pred_region
    _
  $region17: #{tpu_custom_call.1} parent=0 // pred_fallthru
    _

</llo_original>
